<compile_context>
chip_gen: v6e
topology: v6e:2x2x1
jax: 0.10.0
libtpu: 0.0.40
codegen_flags: <defaults>
</compile_context>

<pallas_src>
import functools

import jax
import jax.numpy as jnp
from jax.experimental import pallas as pl
from jax.experimental.pallas import tpu as pltpu


def _round_up(x, m):
    return (x + m - 1) // m * m


# --------------------------------------------------------------------------
# Pallas kernels
# --------------------------------------------------------------------------

def _matmul_bias_kernel(a_ref, b_ref, bias_ref, o_ref):
    """o = a @ b + bias.  a:[tm,Kp] bf16, b:[Kp,Np] bf16 (resident), f32 acc."""
    o_ref[...] = (
        jnp.dot(a_ref[...], b_ref[...], preferred_element_type=jnp.float32)
        + bias_ref[...]
    )


def _instnorm_kernel(x_ref, g_ref, b_ref, o_ref, *, eps):
    """InstanceNorm over the lane (H*W) axis of a [rows, HW] block.

    Each row is one (n, c) pair; gamma/beta are per-row [rows, 1].
    Biased variance + eps, matching torch.nn.InstanceNorm2d(affine=True).
    """
    x = x_ref[...]                                       # [rows, HW] f32
    mean = jnp.mean(x, axis=-1, keepdims=True)           # [rows, 1]
    cen = x - mean
    var = jnp.mean(cen * cen, axis=-1, keepdims=True)    # biased, like PyTorch
    y = cen * jax.lax.rsqrt(var + eps)
    o_ref[...] = y * g_ref[...] + b_ref[...]


# --------------------------------------------------------------------------
# Kernel wrappers
# --------------------------------------------------------------------------

def pallas_matmul_bias(a, b, bias, *, tm=512):
    """a:[M,K] @ b:[K,N] + bias:[N] -> [M,N] f32, bf16 operands on the MXU."""
    M, K = a.shape
    _, N = b.shape
    Kp = _round_up(K, 128)            # zero-padded K: required for correctness
    Np = _round_up(N, 128)            # lane-aligned output / resident weights

    # Clamp the M tile for small problems; keep it a multiple of 256 (v6e/v7x
    # MXU is 2x256x256).  The M grid uses cdiv -> no zero-padded copy of A's
    # rows; garbage rows in the edge block only land in discarded output rows.
    tm = min(tm, _round_up(M, 256))

    a_bf = jnp.zeros((M, Kp), jnp.bfloat16).at[:, :K].set(a.astype(jnp.bfloat16))
    b_bf = jnp.zeros((Kp, Np), jnp.bfloat16).at[:K, :N].set(b.astype(jnp.bfloat16))
    bias_p = jnp.zeros((1, Np), jnp.float32).at[0, :N].set(bias.astype(jnp.float32))

    grid = (pl.cdiv(M, tm),)
    out = pl.pallas_call(
        _matmul_bias_kernel,
        out_shape=jax.ShapeDtypeStruct((M, Np), jnp.float32),
        grid=grid,
        in_specs=[
            pl.BlockSpec((tm, Kp), lambda i: (i, 0)),   # streamed A tiles
            pl.BlockSpec((Kp, Np), lambda i: (0, 0)),   # resident weights
            pl.BlockSpec((1, Np), lambda i: (0, 0)),    # resident bias
        ],
        out_specs=pl.BlockSpec((tm, Np), lambda i: (i, 0)),
        compiler_params=pltpu.CompilerParams(
            dimension_semantics=("parallel",),
            vmem_limit_bytes=32 * 1024 * 1024,
        ),
    )(a_bf, b_bf, bias_p)
    return out[:, :N]


def instance_norm_pallas(x_nhwc, gamma, beta, *, eps=1e-5):
    """InstanceNorm2d(affine=True) on an NHWC activation; returns NCHW f32."""
    N, H, W, C = x_nhwc.shape
    HW = H * W
    R = N * C

    # Lane-dense layout: rows = (n, c), lanes = H*W.
    xr = jnp.transpose(x_nhwc, (0, 3, 1, 2)).reshape(R, HW).astype(jnp.float32)
    g = jnp.tile(gamma.astype(jnp.float32), N).reshape(R, 1)
    b = jnp.tile(beta.astype(jnp.float32), N).reshape(R, 1)

    # Rows per block: multiple of 8 (sublane), capped so in+out double-buffered
    # blocks stay comfortably inside v7x's 32 MiB scoped VMEM.
    target_bytes = 4 * 1024 * 1024
    rows_fit = max(8, (target_bytes // (HW * 4)) // 8 * 8)
    row_blk = min(rows_fit, 256, _round_up(R, 8))

    grid = (pl.cdiv(R, row_blk),)
    out = pl.pallas_call(
        functools.partial(_instnorm_kernel, eps=eps),
        out_shape=jax.ShapeDtypeStruct((R, HW), jnp.float32),
        grid=grid,
        in_specs=[
            pl.BlockSpec((row_blk, HW), lambda i: (i, 0)),
            pl.BlockSpec((row_blk, 1), lambda i: (i, 0)),
            pl.BlockSpec((row_blk, 1), lambda i: (i, 0)),
        ],
        out_specs=pl.BlockSpec((row_blk, HW), lambda i: (i, 0)),
        compiler_params=pltpu.CompilerParams(
            dimension_semantics=("parallel",),
            vmem_limit_bytes=32 * 1024 * 1024,
        ),
    )(xr, g, b)
    return out.reshape(N, C, H, W)


# --------------------------------------------------------------------------
# ConvLayer forward: reflection pad -> conv (im2col + Pallas matmul) -> norm
# --------------------------------------------------------------------------

def _im2col(x, k, stride):
    """x: [N, Hp, Wp, C] (already padded) -> ([N*Ho*Wo, k*k*C], (N, Ho, Wo))."""
    N, Hp, Wp, C = x.shape
    Ho = (Hp - k) // stride + 1
    Wo = (Wp - k) // stride + 1
    cols = []
    for kh in range(k):
        for kw in range(k):
            cols.append(x[:, kh:kh + stride * Ho:stride,
                          kw:kw + stride * Wo:stride, :])
    patches = jnp.stack(cols, axis=3)               # [N, Ho, Wo, k*k, C]
    return patches.reshape(N * Ho * Wo, k * k * C), (N, Ho, Wo)


@functools.partial(jax.jit, static_argnames=("stride", "norm"))
def conv_layer_forward(x_nchw, params, *, stride=1, norm="instance"):
    """ConvLayer.forward: NCHW in -> NCHW out (f32)."""
    w = params["w"]                                  # [Cout, Cin, k, k]
    bias = params["b"]                               # [Cout]
    cout, cin, k, _ = w.shape
    pad = k // 2

    x = jnp.transpose(x_nchw, (0, 2, 3, 1)).astype(jnp.float32)    # -> NHWC
    if pad > 0:
        x = jnp.pad(x, ((0, 0), (pad, pad), (pad, pad), (0, 0)), mode="reflect")

    a, (nb, ho, wo) = _im2col(x, k, stride)
    wm = jnp.transpose(w, (2, 3, 1, 0)).reshape(k * k * cin, cout)
    y = pallas_matmul_bias(a, wm, bias)              # [nb*ho*wo, cout] f32
    y = y.reshape(nb, ho, wo, cout)                  # NHWC

    if norm == "instance":
        return instance_norm_pallas(y, params["g"], params["beta"])  # NCHW
    # TODO(synk): norm='batch' (BatchNorm2d) branch not implemented; module
    # default is 'instance' and the 'None' path is covered below.
    return jnp.transpose(y, (0, 3, 1, 2))            # NCHW


# --------------------------------------------------------------------------

def _init_conv_layer_params(key, cin, cout, k):
    k1, k2, k3, k4 = jax.random.split(key, 4)
    return {
        "w": 0.05 * jax.random.normal(k1, (cout, cin, k, k), jnp.float32),
        "b": 0.05 * jax.random.normal(k2, (cout,), jnp.float32),
        "g": 1.0 + 0.1 * jax.random.normal(k3, (cout,), jnp.float32),
        "beta": 0.1 * jax.random.normal(k4, (cout,), jnp.float32),
    }


if __name__ == "__main__":
    key = jax.random.PRNGKey(0)
    kp1, kp2, kx = jax.random.split(key, 3)

    # ConvLayer(in_channels=4, out_channels=32, kernel_size=3, stride=1,
    #           norm='instance') on a (2, 4, 16, 16) NCHW input.
    params1 = _init_conv_layer_params(kp1, cin=4, cout=32, k=3)
    x = jax.random.normal(kx, (2, 4, 16, 16), jnp.float32)

    out1 = jax.block_until_ready(
        conv_layer_forward(x, params1, stride=1, norm="instance"))
    assert out1.shape == (2, 32, 16, 16), out1.shape
    assert bool(jnp.all(jnp.isfinite(out1))), "non-finite output (instance)"

    # Also exercise the strided / norm='None' path:
    # ConvLayer(4, 8, kernel_size=9, stride=2, norm='None').
    params2 = _init_conv_layer_params(kp2, cin=4, cout=8, k=9)
    out2 = jax.block_until_ready(
        conv_layer_forward(x, params2, stride=2, norm="None"))
    assert out2.shape == (2, 8, 8, 8), out2.shape
    assert bool(jnp.all(jnp.isfinite(out2))), "non-finite output (None)"

    print("KERNEL_OK")
</pallas_src>

<mosaic_0001>
module attributes {stable_mosaic.version = 11 : i64} {
  func.func @_matmul_bias_kernel(%arg0: i32, %arg1: memref<512x128xbf16, #tpu.memory_space<vmem>>, %arg2: memref<128x128xbf16, #tpu.memory_space<vmem>>, %arg3: memref<1x128xf32, #tpu.memory_space<vmem>>, %arg4: memref<512x128xf32, #tpu.memory_space<vmem>>) attributes {dimension_semantics = [#tpu.dimension_semantics<parallel>], iteration_bounds = array<i64: 1>, scalar_prefetch = 0 : i64, scratch_operands = 0 : i64, tpu.core_type = #tpu.core_type<tc>, window_params = [{transform_indices = @transform_0, window_bounds = array<i64: 512, 128>}, {pipeline_mode = #tpu.pipeline_mode<synchronous>, transform_indices = @transform_1, window_bounds = array<i64: 128, 128>}, {pipeline_mode = #tpu.pipeline_mode<synchronous>, transform_indices = @transform_2, window_bounds = array<i64: 1, 128>}, {transform_indices = @transform_3, window_bounds = array<i64: 512, 128>}]} {
    %c0 = arith.constant 0 : index
    %c0_0 = arith.constant 0 : index
    %0 = vector.load %arg1[%c0, %c0_0] : memref<512x128xbf16, #tpu.memory_space<vmem>>, vector<512x128xbf16>
    %c0_1 = arith.constant 0 : index
    %c0_2 = arith.constant 0 : index
    %1 = vector.load %arg2[%c0_1, %c0_2] : memref<128x128xbf16, #tpu.memory_space<vmem>>, vector<128x128xbf16>
    %cst = arith.constant dense<0.000000e+00> : vector<512x128xf32>
    %2 = tpu.matmul %0, %1, %cst {dimension_numbers = #tpu.dot_dimension_numbers<[1], [0], [0], [1], [0, 0, 1, 1], [], []>} : vector<512x128xbf16>, vector<128x128xbf16>, vector<512x128xf32> -> vector<512x128xf32>
    %c0_3 = arith.constant 0 : index
    %c0_4 = arith.constant 0 : index
    %3 = vector.load %arg3[%c0_3, %c0_4] : memref<1x128xf32, #tpu.memory_space<vmem>>, vector<1x128xf32>
    %4 = vector.broadcast %3 : vector<1x128xf32> to vector<512x128xf32>
    %5 = arith.addf %2, %4 : vector<512x128xf32>
    %c0_5 = arith.constant 0 : index
    %c0_6 = arith.constant 0 : index
    %6 = vector.load %arg4[%c0_5, %c0_6] : memref<512x128xf32, #tpu.memory_space<vmem>>, vector<512x128xf32>
    tpu.vector_store %arg4[%c0_5, %c0_6], %5 {strides = array<i32>} : memref<512x128xf32, #tpu.memory_space<vmem>>, vector<512x128xf32>,
    return
  }
  func.func @transform_0(%arg0: i32) -> (i32, i32) {
    %c0_i32 = arith.constant 0 : i32
    %c0_i32_0 = arith.constant 0 : i32
    return %arg0, %c0_i32 : i32, i32
  }
  func.func @transform_1(%arg0: i32) -> (i32, i32) {
    %c0_i32 = arith.constant 0 : i32
    %c0_i32_0 = arith.constant 0 : i32
    %c0_i32_1 = arith.constant 0 : i32
    return %c0_i32, %c0_i32_0 : i32, i32
  }
  func.func @transform_2(%arg0: i32) -> (i32, i32) {
    %c0_i32 = arith.constant 0 : i32
    %c0_i32_0 = arith.constant 0 : i32
    %c0_i32_1 = arith.constant 0 : i32
    return %c0_i32, %c0_i32_0 : i32, i32
  }
  func.func @transform_3(%arg0: i32) -> (i32, i32) {
    %c0_i32 = arith.constant 0 : i32
    %c0_i32_0 = arith.constant 0 : i32
    return %arg0, %c0_i32 : i32, i32
  }
}

module attributes {stable_mosaic.version = 11 : i64} {
  func.func @_instnorm_kernel(%arg0: i32, %arg1: memref<64x256xf32, #tpu.memory_space<vmem>>, %arg2: memref<64x1xf32, #tpu.memory_space<vmem>>, %arg3: memref<64x1xf32, #tpu.memory_space<vmem>>, %arg4: memref<64x256xf32, #tpu.memory_space<vmem>>) attributes {dimension_semantics = [#tpu.dimension_semantics<parallel>], iteration_bounds = array<i64: 1>, scalar_prefetch = 0 : i64, scratch_operands = 0 : i64, tpu.core_type = #tpu.core_type<tc>, window_params = [{transform_indices = @transform_0, window_bounds = array<i64: 64, 256>}, {transform_indices = @transform_1, window_bounds = array<i64: 64, 1>}, {transform_indices = @transform_2, window_bounds = array<i64: 64, 1>}, {transform_indices = @transform_3, window_bounds = array<i64: 64, 256>}]} {
    %c0 = arith.constant 0 : index
    %c0_0 = arith.constant 0 : index
    %0 = vector.load %arg1[%c0, %c0_0] : memref<64x256xf32, #tpu.memory_space<vmem>>, vector<64x256xf32>
    %cst = arith.constant dense<0.000000e+00> : vector<64xf32>
    %1 = vector.multi_reduction <add>, %0, %cst [1] : vector<64x256xf32> to vector<64xf32>
    %2 = vector.shape_cast %1 : vector<64xf32> to vector<64x1xf32>
    %cst_1 = arith.constant 2.560000e+02 : f32
    %3 = vector.broadcast %cst_1 : f32 to vector<64x1xf32>
    %4 = arith.divf %2, %3 : vector<64x1xf32>
    %5 = vector.broadcast %4 : vector<64x1xf32> to vector<64x256xf32>
    %6 = arith.subf %0, %5 : vector<64x256xf32>
    %7 = arith.mulf %6, %6 : vector<64x256xf32>
    %cst_2 = arith.constant dense<0.000000e+00> : vector<64xf32>
    %8 = vector.multi_reduction <add>, %7, %cst_2 [1] : vector<64x256xf32> to vector<64xf32>
    %9 = vector.shape_cast %8 : vector<64xf32> to vector<64x1xf32>
    %cst_3 = arith.constant 2.560000e+02 : f32
    %10 = vector.broadcast %cst_3 : f32 to vector<64x1xf32>
    %11 = arith.divf %9, %10 : vector<64x1xf32>
    %cst_4 = arith.constant 9.99999974E-6 : f32
    %12 = vector.broadcast %cst_4 : f32 to vector<64x1xf32>
    %13 = arith.addf %11, %12 : vector<64x1xf32>
    %14 = math.rsqrt %13 : vector<64x1xf32>
    %15 = vector.broadcast %14 : vector<64x1xf32> to vector<64x256xf32>
    %16 = arith.mulf %6, %15 : vector<64x256xf32>
    %c0_5 = arith.constant 0 : index
    %c0_6 = arith.constant 0 : index
    %17 = vector.load %arg2[%c0_5, %c0_6] : memref<64x1xf32, #tpu.memory_space<vmem>>, vector<64x1xf32>
    %18 = vector.broadcast %17 : vector<64x1xf32> to vector<64x256xf32>
    %19 = arith.mulf %16, %18 : vector<64x256xf32>
    %c0_7 = arith.constant 0 : index
    %c0_8 = arith.constant 0 : index
    %20 = vector.load %arg3[%c0_7, %c0_8] : memref<64x1xf32, #tpu.memory_space<vmem>>, vector<64x1xf32>
    %21 = vector.broadcast %20 : vector<64x1xf32> to vector<64x256xf32>
    %22 = arith.addf %19, %21 : vector<64x256xf32>
    %c0_9 = arith.constant 0 : index
    %c0_10 = arith.constant 0 : index
    %23 = vector.load %arg4[%c0_9, %c0_10] : memref<64x256xf32, #tpu.memory_space<vmem>>, vector<64x256xf32>
    tpu.vector_store %arg4[%c0_9, %c0_10], %22 {strides = array<i32>} : memref<64x256xf32, #tpu.memory_space<vmem>>, vector<64x256xf32>,
    return
  }
  func.func @transform_0(%arg0: i32) -> (i32, i32) {
    %c0_i32 = arith.constant 0 : i32
    %c0_i32_0 = arith.constant 0 : i32
    return %arg0, %c0_i32 : i32, i32
  }
  func.func @transform_1(%arg0: i32) -> (i32, i32) {
    %c0_i32 = arith.constant 0 : i32
    %c0_i32_0 = arith.constant 0 : i32
    return %arg0, %c0_i32 : i32, i32
  }
  func.func @transform_2(%arg0: i32) -> (i32, i32) {
    %c0_i32 = arith.constant 0 : i32
    %c0_i32_0 = arith.constant 0 : i32
    return %arg0, %c0_i32 : i32, i32
  }
  func.func @transform_3(%arg0: i32) -> (i32, i32) {
    %c0_i32 = arith.constant 0 : i32
    %c0_i32_0 = arith.constant 0 : i32
    return %arg0, %c0_i32 : i32, i32
  }
}

</mosaic_0001>

<llo_original>
// kernel: tile.13
$region0: #{tile.13}
  #allocation0 [shape = 's32[1]{0}', space=sflag, size = 0x4, scoped, tag = 'scoped memory for tile.13']
  %s0 = inlined_call_operand.vmem [shape: f32[32], index: 0, kind: input, shape index: {}]
  %s1 = inlined_call_operand.vmem [shape: f32[2,32], index: 1, kind: output, shape index: {}]
  // Predicated region
  $region2: #{tile.13} parent=0 // pred_check
    _
  $region3: #{tile.13} parent=0 // pred_check_branch
    %3 = sbr.rel (0) target = $region5
  $region4: #{tile.13} parent=0 // pred_region
    _
  $region5: #{tile.13} parent=0 // pred_fallthru
    _
  %v4 = vld [vmem:[%s0] ss:$0 sm:$0xff]
  %5 = vst [vmem:[%s1] sm:$0x3] %v4

// kernel: tile.0
$region0: #{tile.0}
  %s0 = inlined_call_operand.vmem [shape: f32[2,32], index: 0, kind: input, shape index: {}]
  %s1 = inlined_call_operand.vmem [shape: f32[64,1], index: 1, kind: output, shape index: {}]
  $region1: #{tile.0} parent=0
    #allocation0 [shape = 'u8[4096]{0}', space=vmem, size = 0x1000, scoped, tag = 'scoped mem for input reshape']
    %s3 = sshll.u32 1, 2
    %s4 = ssub.s32 %s3, 1
    %v5 = vld [vmem:[%s0] sm:%s4]
    %6 = vst [vmem:[#allocation0] sm:%s4] %v5
    %v7 = vld [vmem:[#allocation0] sm:$0x3]
    %vm8 = vcmask 7168
    %9 = vst.msk [vmem:[%s1] sm:$0x1] %vm8, %v7
    %s10 = scalar_lea.vmem %s1, 31
    %11 = vst.msk [vmem:[%s10] sm:$0x2] %vm8, %v7
    %v12 = vld [vmem:[#allocation0] sm:$0x3]
    %13 = vrot.lane.b32.xlu0 %v12, 127
    %v14 = vpop.permute.xlu0 %13
    %vm15 = vcmask 7168
    %s16 = scalar_lea.vmem %s1, 1
    %17 = vst.msk [vmem:[%s16] sm:$0x1] %vm15, %v14
    %s18 = scalar_lea.vmem %s1, 32
    %19 = vst.msk [vmem:[%s18] sm:$0x2] %vm15, %v14
    %v20 = vld [vmem:[#allocation0] sm:$0x3]
    %21 = vrot.lane.b32.xlu0 %v20, 126
    %v22 = vpop.permute.xlu0 %21
    %vm23 = vcmask 7168
    %s24 = scalar_lea.vmem %s1, 2
    %25 = vst.msk [vmem:[%s24] sm:$0x1] %vm23, %v22
    %s26 = scalar_lea.vmem %s1, 33
    %27 = vst.msk [vmem:[%s26] sm:$0x2] %vm23, %v22
    %v28 = vld [vmem:[#allocation0] sm:$0x3]
    %29 = vrot.lane.b32.xlu0 %v28, 125
    %v30 = vpop.permute.xlu0 %29
    %vm31 = vcmask 7168
    %s32 = scalar_lea.vmem %s1, 3
    %33 = vst.msk [vmem:[%s32] sm:$0x1] %vm31, %v30
    %s34 = scalar_lea.vmem %s1, 34
    %35 = vst.msk [vmem:[%s34] sm:$0x2] %vm31, %v30
    %v36 = vld [vmem:[#allocation0] sm:$0x3]
    %37 = vrot.lane.b32.xlu0 %v36, 124
    %v38 = vpop.permute.xlu0 %37
    %vm39 = vcmask 7168
    %s40 = scalar_lea.vmem %s1, 4
    %41 = vst.msk [vmem:[%s40] sm:$0x1] %vm39, %v38
    %s42 = scalar_lea.vmem %s1, 35
    %43 = vst.msk [vmem:[%s42] sm:$0x2] %vm39, %v38
    %v44 = vld [vmem:[#allocation0] sm:$0x3]
    %45 = vrot.lane.b32.xlu0 %v44, 123
    %v46 = vpop.permute.xlu0 %45
    %vm47 = vcmask 7168
    %s48 = scalar_lea.vmem %s1, 5
    %49 = vst.msk [vmem:[%s48] sm:$0x1] %vm47, %v46
    %s50 = scalar_lea.vmem %s1, 36
    %51 = vst.msk [vmem:[%s50] sm:$0x2] %vm47, %v46
    %v52 = vld [vmem:[#allocation0] sm:$0x3]
    %53 = vrot.lane.b32.xlu0 %v52, 122
    %v54 = vpop.permute.xlu0 %53
    %vm55 = vcmask 7168
    %s56 = scalar_lea.vmem %s1, 6
    %57 = vst.msk [vmem:[%s56] sm:$0x1] %vm55, %v54
    %s58 = scalar_lea.vmem %s1, 37
    %59 = vst.msk [vmem:[%s58] sm:$0x2] %vm55, %v54
    %v60 = vld [vmem:[#allocation0] sm:$0x3]
    %61 = vrot.lane.b32.xlu0 %v60, 121
    %v62 = vpop.permute.xlu0 %61
    %vm63 = vcmask 7168
    %s64 = scalar_lea.vmem %s1, 7
    %65 = vst.msk [vmem:[%s64] sm:$0x1] %vm63, %v62
    %s66 = scalar_lea.vmem %s1, 38
    %67 = vst.msk [vmem:[%s66] sm:$0x2] %vm63, %v62
    %v68 = vld [vmem:[#allocation0] sm:$0x3]
    %69 = vrot.lane.b32.xlu0 %v68, 120
    %v70 = vpop.permute.xlu0 %69
    %vm71 = vcmask 7168
    %s72 = scalar_lea.vmem %s1, 8
    %73 = vst.msk [vmem:[%s72] sm:$0x1] %vm71, %v70
    %s74 = scalar_lea.vmem %s1, 39
    %75 = vst.msk [vmem:[%s74] sm:$0x2] %vm71, %v70
    %v76 = vld [vmem:[#allocation0] sm:$0x3]
    %77 = vrot.lane.b32.xlu0 %v76, 119
    %v78 = vpop.permute.xlu0 %77
    %vm79 = vcmask 7168
    %s80 = scalar_lea.vmem %s1, 9
    %81 = vst.msk [vmem:[%s80] sm:$0x1] %vm79, %v78
    %s82 = scalar_lea.vmem %s1, 40
    %83 = vst.msk [vmem:[%s82] sm:$0x2] %vm79, %v78
    %v84 = vld [vmem:[#allocation0] sm:$0x3]
    %85 = vrot.lane.b32.xlu0 %v84, 118
    %v86 = vpop.permute.xlu0 %85
    %vm87 = vcmask 7168
    %s88 = scalar_lea.vmem %s1, 10
    %89 = vst.msk [vmem:[%s88] sm:$0x1] %vm87, %v86
    %s90 = scalar_lea.vmem %s1, 41
    %91 = vst.msk [vmem:[%s90] sm:$0x2] %vm87, %v86
    %v92 = vld [vmem:[#allocation0] sm:$0x3]
    %93 = vrot.lane.b32.xlu0 %v92, 117
    %v94 = vpop.permute.xlu0 %93
    %vm95 = vcmask 7168
    %s96 = scalar_lea.vmem %s1, 11
    %97 = vst.msk [vmem:[%s96] sm:$0x1] %vm95, %v94
    %s98 = scalar_lea.vmem %s1, 42
    %99 = vst.msk [vmem:[%s98] sm:$0x2] %vm95, %v94
    %v100 = vld [vmem:[#allocation0] sm:$0x3]
    %101 = vrot.lane.b32.xlu0 %v100, 116
    %v102 = vpop.permute.xlu0 %101
    %vm103 = vcmask 7168
    %s104 = scalar_lea.vmem %s1, 12
    %105 = vst.msk [vmem:[%s104] sm:$0x1] %vm103, %v102
    %s106 = scalar_lea.vmem %s1, 43
    %107 = vst.msk [vmem:[%s106] sm:$0x2] %vm103, %v102
    %v108 = vld [vmem:[#allocation0] sm:$0x3]
    %109 = vrot.lane.b32.xlu0 %v108, 115
    %v110 = vpop.permute.xlu0 %109
    %vm111 = vcmask 7168
    %s112 = scalar_lea.vmem %s1, 13
    %113 = vst.msk [vmem:[%s112] sm:$0x1] %vm111, %v110
    %s114 = scalar_lea.vmem %s1, 44
    %115 = vst.msk [vmem:[%s114] sm:$0x2] %vm111, %v110
    %v116 = vld [vmem:[#allocation0] sm:$0x3]
    %117 = vrot.lane.b32.xlu0 %v116, 114
    %v118 = vpop.permute.xlu0 %117
    %vm119 = vcmask 7168
    %s120 = scalar_lea.vmem %s1, 14
    %121 = vst.msk [vmem:[%s120] sm:$0x1] %vm119, %v118
    %s122 = scalar_lea.vmem %s1, 45
    %123 = vst.msk [vmem:[%s122] sm:$0x2] %vm119, %v118
    %v124 = vld [vmem:[#allocation0] sm:$0x3]
    %125 = vrot.lane.b32.xlu0 %v124, 113
    %v126 = vpop.permute.xlu0 %125
    %vm127 = vcmask 7168
    %s128 = scalar_lea.vmem %s1, 15
    %129 = vst.msk [vmem:[%s128] sm:$0x1] %vm127, %v126
    %s130 = scalar_lea.vmem %s1, 46
    %131 = vst.msk [vmem:[%s130] sm:$0x2] %vm127, %v126
    %v132 = vld [vmem:[#allocation0] sm:$0x3]
    %133 = vrot.lane.b32.xlu0 %v132, 112
    %v134 = vpop.permute.xlu0 %133
    %vm135 = vcmask 7168
    %s136 = scalar_lea.vmem %s1, 16
    %137 = vst.msk [vmem:[%s136] sm:$0x1] %vm135, %v134
    %s138 = scalar_lea.vmem %s1, 47
    %139 = vst.msk [vmem:[%s138] sm:$0x2] %vm135, %v134
    %v140 = vld [vmem:[#allocation0] sm:$0x3]
    %141 = vrot.lane.b32.xlu0 %v140, 111
    %v142 = vpop.permute.xlu0 %141
    %vm143 = vcmask 7168
    %s144 = scalar_lea.vmem %s1, 17
    %145 = vst.msk [vmem:[%s144] sm:$0x1] %vm143, %v142
    %s146 = scalar_lea.vmem %s1, 48
    %147 = vst.msk [vmem:[%s146] sm:$0x2] %vm143, %v142
    %v148 = vld [vmem:[#allocation0] sm:$0x3]
    %149 = vrot.lane.b32.xlu0 %v148, 110
    %v150 = vpop.permute.xlu0 %149
    %vm151 = vcmask 7168
    %s152 = scalar_lea.vmem %s1, 18
    %153 = vst.msk [vmem:[%s152] sm:$0x1] %vm151, %v150
    %s154 = scalar_lea.vmem %s1, 49
    %155 = vst.msk [vmem:[%s154] sm:$0x2] %vm151, %v150
    %v156 = vld [vmem:[#allocation0] sm:$0x3]
    %157 = vrot.lane.b32.xlu0 %v156, 109
    %v158 = vpop.permute.xlu0 %157
    %vm159 = vcmask 7168
    %s160 = scalar_lea.vmem %s1, 19
    %161 = vst.msk [vmem:[%s160] sm:$0x1] %vm159, %v158
    %s162 = scalar_lea.vmem %s1, 50
    %163 = vst.msk [vmem:[%s162] sm:$0x2] %vm159, %v158
    %v164 = vld [vmem:[#allocation0] sm:$0x3]
    %165 = vrot.lane.b32.xlu0 %v164, 108
    %v166 = vpop.permute.xlu0 %165
    %vm167 = vcmask 7168
    %s168 = scalar_lea.vmem %s1, 20
    %169 = vst.msk [vmem:[%s168] sm:$0x1] %vm167, %v166
    %s170 = scalar_lea.vmem %s1, 51
    %171 = vst.msk [vmem:[%s170] sm:$0x2] %vm167, %v166
    %v172 = vld [vmem:[#allocation0] sm:$0x3]
    %173 = vrot.lane.b32.xlu0 %v172, 107
    %v174 = vpop.permute.xlu0 %173
    %vm175 = vcmask 7168
    %s176 = scalar_lea.vmem %s1, 21
    %177 = vst.msk [vmem:[%s176] sm:$0x1] %vm175, %v174
    %s178 = scalar_lea.vmem %s1, 52
    %179 = vst.msk [vmem:[%s178] sm:$0x2] %vm175, %v174
    %v180 = vld [vmem:[#allocation0] sm:$0x3]
    %181 = vrot.lane.b32.xlu0 %v180, 106
    %v182 = vpop.permute.xlu0 %181
    %vm183 = vcmask 7168
    %s184 = scalar_lea.vmem %s1, 22
    %185 = vst.msk [vmem:[%s184] sm:$0x1] %vm183, %v182
    %s186 = scalar_lea.vmem %s1, 53
    %187 = vst.msk [vmem:[%s186] sm:$0x2] %vm183, %v182
    %v188 = vld [vmem:[#allocation0] sm:$0x3]
    %189 = vrot.lane.b32.xlu0 %v188, 105
    %v190 = vpop.permute.xlu0 %189
    %vm191 = vcmask 7168
    %s192 = scalar_lea.vmem %s1, 23
    %193 = vst.msk [vmem:[%s192] sm:$0x1] %vm191, %v190
    %s194 = scalar_lea.vmem %s1, 54
    %195 = vst.msk [vmem:[%s194] sm:$0x2] %vm191, %v190
    %v196 = vld [vmem:[#allocation0] sm:$0x3]
    %197 = vrot.lane.b32.xlu0 %v196, 104
    %v198 = vpop.permute.xlu0 %197
    %vm199 = vcmask 7168
    %s200 = scalar_lea.vmem %s1, 24
    %201 = vst.msk [vmem:[%s200] sm:$0x1] %vm199, %v198
    %s202 = scalar_lea.vmem %s1, 55
    %203 = vst.msk [vmem:[%s202] sm:$0x2] %vm199, %v198
    %v204 = vld [vmem:[#allocation0] sm:$0x3]
    %205 = vrot.lane.b32.xlu0 %v204, 103
    %v206 = vpop.permute.xlu0 %205
    %vm207 = vcmask 7168
    %s208 = scalar_lea.vmem %s1, 25
    %209 = vst.msk [vmem:[%s208] sm:$0x1] %vm207, %v206
    %s210 = scalar_lea.vmem %s1, 56
    %211 = vst.msk [vmem:[%s210] sm:$0x2] %vm207, %v206
    %v212 = vld [vmem:[#allocation0] sm:$0x3]
    %213 = vrot.lane.b32.xlu0 %v212, 102
    %v214 = vpop.permute.xlu0 %213
    %vm215 = vcmask 7168
    %s216 = scalar_lea.vmem %s1, 26
    %217 = vst.msk [vmem:[%s216] sm:$0x1] %vm215, %v214
    %s218 = scalar_lea.vmem %s1, 57
    %219 = vst.msk [vmem:[%s218] sm:$0x2] %vm215, %v214
    %v220 = vld [vmem:[#allocation0] sm:$0x3]
    %221 = vrot.lane.b32.xlu0 %v220, 101
    %v222 = vpop.permute.xlu0 %221
    %vm223 = vcmask 7168
    %s224 = scalar_lea.vmem %s1, 27
    %225 = vst.msk [vmem:[%s224] sm:$0x1] %vm223, %v222
    %s226 = scalar_lea.vmem %s1, 58
    %227 = vst.msk [vmem:[%s226] sm:$0x2] %vm223, %v222
    %v228 = vld [vmem:[#allocation0] sm:$0x3]
    %229 = vrot.lane.b32.xlu0 %v228, 100
    %v230 = vpop.permute.xlu0 %229
    %vm231 = vcmask 7168
    %s232 = scalar_lea.vmem %s1, 28
    %233 = vst.msk [vmem:[%s232] sm:$0x1] %vm231, %v230
    %s234 = scalar_lea.vmem %s1, 59
    %235 = vst.msk [vmem:[%s234] sm:$0x2] %vm231, %v230
    %v236 = vld [vmem:[#allocation0] sm:$0x3]
    %237 = vrot.lane.b32.xlu0 %v236, 99
    %v238 = vpop.permute.xlu0 %237
    %vm239 = vcmask 7168
    %s240 = scalar_lea.vmem %s1, 29
    %241 = vst.msk [vmem:[%s240] sm:$0x1] %vm239, %v238
    %s242 = scalar_lea.vmem %s1, 60
    %243 = vst.msk [vmem:[%s242] sm:$0x2] %vm239, %v238
    %v244 = vld [vmem:[#allocation0] sm:$0x3]
    %245 = vrot.lane.b32.xlu0 %v244, 98
    %v246 = vpop.permute.xlu0 %245
    %vm247 = vcmask 7168
    %s248 = scalar_lea.vmem %s1, 30
    %249 = vst.msk [vmem:[%s248] sm:$0x1] %vm247, %v246
    %s250 = scalar_lea.vmem %s1, 61
    %251 = vst.msk [vmem:[%s250] sm:$0x2] %vm247, %v246
    %v252 = vld [vmem:[#allocation0] sm:$0x3]
    %253 = vrot.lane.b32.xlu0 %v252, 97
    %v254 = vpop.permute.xlu0 %253
    %vm255 = vcmask 7168
    %s256 = scalar_lea.vmem %s1, 31
    %257 = vst.msk [vmem:[%s256] sm:$0x1] %vm255, %v254
    %s258 = scalar_lea.vmem %s1, 62
    %259 = vst.msk [vmem:[%s258] sm:$0x2] %vm255, %v254

// kernel: conv_layer_forward.2
$region0: #{conv_layer_forward.2}
  #allocation0 [shape = 'u32[]', space=smem, size = 0x4, offset = 0x4, fixed_abs, tag = 'smem constant byte address 0x4 - core index']
  #allocation1 [shape = 'u32[144,128]{1,0:T(1,128)}', space=vmem, size = 0x12000, scoped, tag = 'internal scratch']
  %s0 = inlined_call_operand.vmem [shape: bf16[512,128], index: 0, kind: input, shape index: {}]
  %s1 = inlined_call_operand.vmem [shape: bf16[128,128], index: 1, kind: input, shape index: {}]
  %s2 = inlined_call_operand.vmem [shape: f32[1,128], index: 2, kind: input, shape index: {}]
  %s3 = inlined_call_operand.vmem [shape: f32[512,128], index: 3, kind: output, shape index: {}]
  %s4 = sld [smem:[#allocation0]]
  $region22: #{conv_layer_forward.2} parent=0
    _
  %s6 = ssub.s32 1, %s4
  %s7 = scalar_select 0, %s6, %s4
  // Predicated region
  $region2: #{conv_layer_forward.2} parent=0 // pred_check
    _
  $region3: #{conv_layer_forward.2} parent=0 // pred_check_branch
    %9 = sbr.rel (0) target = $region5
  $region4: #{conv_layer_forward.2} parent=0 // pred_region
    _
  $region5: #{conv_layer_forward.2} parent=0 // pred_fallthru
    _
  // Predicated region
  $region6: #{conv_layer_forward.2} parent=0 // pred_check
    _
  $region7: #{conv_layer_forward.2} parent=0 // pred_check_branch
    %11 = sbr.rel (0) target = $region9
  $region8: #{conv_layer_forward.2} parent=0 // pred_region
    _
  $region9: #{conv_layer_forward.2} parent=0 // pred_fallthru
    _
  // Predicated region
  $region10: #{conv_layer_forward.2} parent=0 // pred_check
    _
  $region11: #{conv_layer_forward.2} parent=0 // pred_check_branch
    %13 = sbr.rel (0) target = $region13
  $region12: #{conv_layer_forward.2} parent=0 // pred_region
    _
  $region13: #{conv_layer_forward.2} parent=0 // pred_fallthru
    _
  %v15 = vld [vmem:[%s0] sm:$0xf]
  %v16 = vld [vmem:[%s0 + $0x4] sm:$0xf]
  %v17 = vld [vmem:[%s0 + $0x8] sm:$0xf]
  %v18 = vld [vmem:[%s0 + $0xc] sm:$0xf]
  %v19 = vld [vmem:[%s0 + $0x10] sm:$0xf]
  %v20 = vld [vmem:[%s0 + $0x14] sm:$0xf]
  %v21 = vld [vmem:[%s0 + $0x18] sm:$0xf]
  %v22 = vld [vmem:[%s0 + $0x1c] sm:$0xf]
  %v23 = vld [vmem:[%s0 + $0x20] sm:$0xf]
  %v24 = vld [vmem:[%s0 + $0x24] sm:$0xf]
  %v25 = vld [vmem:[%s0 + $0x28] sm:$0xf]
  %v26 = vld [vmem:[%s0 + $0x2c] sm:$0xf]
  %v27 = vld [vmem:[%s0 + $0x30] sm:$0xf]
  %v28 = vld [vmem:[%s0 + $0x34] sm:$0xf]
  %v29 = vld [vmem:[%s0 + $0x38] sm:$0xf]
  %v30 = vld [vmem:[%s0 + $0x3c] sm:$0xf]
  %v31 = vld [vmem:[%s0 + $0x40] sm:$0xf]
  %v32 = vld [vmem:[%s0 + $0x44] sm:$0xf]
  %v33 = vld [vmem:[%s0 + $0x48] sm:$0xf]
  %v34 = vld [vmem:[%s0 + $0x4c] sm:$0xf]
  %v35 = vld [vmem:[%s0 + $0x50] sm:$0xf]
  %v36 = vld [vmem:[%s0 + $0x54] sm:$0xf]
  %v37 = vld [vmem:[%s0 + $0x58] sm:$0xf]
  %v38 = vld [vmem:[%s0 + $0x5c] sm:$0xf]
  %v39 = vld [vmem:[%s0 + $0x60] sm:$0xf]
  %v40 = vld [vmem:[%s0 + $0x64] sm:$0xf]
  %v41 = vld [vmem:[%s0 + $0x68] sm:$0xf]
  %v42 = vld [vmem:[%s0 + $0x6c] sm:$0xf]
  %v43 = vld [vmem:[%s0 + $0x70] sm:$0xf]
  %v44 = vld [vmem:[%s0 + $0x74] sm:$0xf]
  %v45 = vld [vmem:[%s0 + $0x78] sm:$0xf]
  %v46 = vld [vmem:[%s0 + $0x7c] sm:$0xf]
  %v47 = vld [vmem:[%s0 + $0x80] sm:$0xf]
  %v48 = vld [vmem:[%s0 + $0x84] sm:$0xf]
  %v49 = vld [vmem:[%s0 + $0x88] sm:$0xf]
  %v50 = vld [vmem:[%s0 + $0x8c] sm:$0xf]
  %v51 = vld [vmem:[%s0 + $0x90] sm:$0xf]
  %v52 = vld [vmem:[%s0 + $0x94] sm:$0xf]
  %v53 = vld [vmem:[%s0 + $0x98] sm:$0xf]
  %v54 = vld [vmem:[%s0 + $0x9c] sm:$0xf]
  %v55 = vld [vmem:[%s0 + $0xa0] sm:$0xf]
  %v56 = vld [vmem:[%s0 + $0xa4] sm:$0xf]
  %v57 = vld [vmem:[%s0 + $0xa8] sm:$0xf]
  %v58 = vld [vmem:[%s0 + $0xac] sm:$0xf]
  %v59 = vld [vmem:[%s0 + $0xb0] sm:$0xf]
  %v60 = vld [vmem:[%s0 + $0xb4] sm:$0xf]
  %v61 = vld [vmem:[%s0 + $0xb8] sm:$0xf]
  %v62 = vld [vmem:[%s0 + $0xbc] sm:$0xf]
  %v63 = vld [vmem:[%s0 + $0xc0] sm:$0xf]
  %v64 = vld [vmem:[%s0 + $0xc4] sm:$0xf]
  %v65 = vld [vmem:[%s0 + $0xc8] sm:$0xf]
  %v66 = vld [vmem:[%s0 + $0xcc] sm:$0xf]
  %v67 = vld [vmem:[%s0 + $0xd0] sm:$0xf]
  %v68 = vld [vmem:[%s0 + $0xd4] sm:$0xf]
  %v69 = vld [vmem:[%s0 + $0xd8] sm:$0xf]
  %v70 = vld [vmem:[%s0 + $0xdc] sm:$0xf]
  %v71 = vld [vmem:[%s0 + $0xe0] sm:$0xf]
  %v72 = vld [vmem:[%s0 + $0xe4] sm:$0xf]
  %v73 = vld [vmem:[%s0 + $0xe8] sm:$0xf]
  %v74 = vld [vmem:[%s0 + $0xec] sm:$0xf]
  %v75 = vld [vmem:[%s0 + $0xf0] sm:$0xf]
  %v76 = vld [vmem:[%s0 + $0xf4] sm:$0xf]
  %v77 = vld [vmem:[%s0 + $0xf8] sm:$0xf]
  %v78 = vld [vmem:[%s0 + $0xfc] sm:$0xf]
  %v79 = vld [vmem:[%s1] sm:$0xf]
  %v80 = vld [vmem:[%s1 + $0x4] sm:$0xf]
  %v81 = vld [vmem:[%s1 + $0x8] sm:$0xf]
  %v82 = vld [vmem:[%s1 + $0xc] sm:$0xf]
  %v83 = vld [vmem:[%s1 + $0x10] sm:$0xf]
  %v84 = vld [vmem:[%s1 + $0x14] sm:$0xf]
  %v85 = vld [vmem:[%s1 + $0x18] sm:$0xf]
  %v86 = vld [vmem:[%s1 + $0x1c] sm:$0xf]
  %v87 = vld [vmem:[%s1 + $0x20] sm:$0xf]
  %v88 = vld [vmem:[%s1 + $0x24] sm:$0xf]
  %v89 = vld [vmem:[%s1 + $0x28] sm:$0xf]
  %v90 = vld [vmem:[%s1 + $0x2c] sm:$0xf]
  %v91 = vld [vmem:[%s1 + $0x30] sm:$0xf]
  %v92 = vld [vmem:[%s1 + $0x34] sm:$0xf]
  %v93 = vld [vmem:[%s1 + $0x38] sm:$0xf]
  %v94 = vld [vmem:[%s1 + $0x3c] sm:$0xf]
  %v95 = vld [vmem:[%s2] sm:$0x1]
  %v97 = vlaneseq
  %v98 = vshrl.u32 %v97, 7
  %v99 = vsub.s32 0, %v98
  %v100 = vrot.slane %v95, %v99
  %v166 = vunpack.c.l.b16 %v15
  %v167 = vunpack.c.l.b16 %v16
  %v168 = vunpack.c.l.b16 %v17
  %v169 = vunpack.c.l.b16 %v18
  %v170 = vunpack.c.l.b16 %v19
  %v171 = vunpack.c.l.b16 %v20
  %v172 = vunpack.c.l.b16 %v21
  %v173 = vunpack.c.l.b16 %v22
  %v174 = vunpack.c.l.b16 %v23
  %v175 = vunpack.c.l.b16 %v24
  %v176 = vunpack.c.l.b16 %v25
  %v177 = vunpack.c.l.b16 %v26
  %v178 = vunpack.c.l.b16 %v27
  %v179 = vunpack.c.l.b16 %v28
  %v180 = vunpack.c.l.b16 %v29
  %v181 = vunpack.c.l.b16 %v30
  %v182 = vunpack.c.l.b16 %v31
  %v183 = vunpack.c.l.b16 %v32
  %v184 = vunpack.c.l.b16 %v33
  %v185 = vunpack.c.l.b16 %v34
  %v186 = vunpack.c.l.b16 %v35
  %v187 = vunpack.c.l.b16 %v36
  %v188 = vunpack.c.l.b16 %v37
  %v189 = vunpack.c.l.b16 %v38
  %v190 = vunpack.c.l.b16 %v39
  %v191 = vunpack.c.l.b16 %v40
  %v192 = vunpack.c.l.b16 %v41
  %v193 = vunpack.c.l.b16 %v42
  %v194 = vunpack.c.l.b16 %v43
  %v195 = vunpack.c.l.b16 %v44
  %v196 = vunpack.c.l.b16 %v45
  %v197 = vunpack.c.l.b16 %v46
  %v198 = vunpack.c.l.b16 %v47
  %v199 = vunpack.c.l.b16 %v48
  %v200 = vunpack.c.l.b16 %v49
  %v201 = vunpack.c.l.b16 %v50
  %v202 = vunpack.c.l.b16 %v51
  %v203 = vunpack.c.l.b16 %v52
  %v204 = vunpack.c.l.b16 %v53
  %v205 = vunpack.c.l.b16 %v54
  %v206 = vunpack.c.l.b16 %v55
  %v207 = vunpack.c.l.b16 %v56
  %v208 = vunpack.c.l.b16 %v57
  %v209 = vunpack.c.l.b16 %v58
  %v210 = vunpack.c.l.b16 %v59
  %v211 = vunpack.c.l.b16 %v60
  %v212 = vunpack.c.l.b16 %v61
  %v213 = vunpack.c.l.b16 %v62
  %v214 = vunpack.c.l.b16 %v63
  %v215 = vunpack.c.l.b16 %v64
  %v216 = vunpack.c.l.b16 %v65
  %v217 = vunpack.c.l.b16 %v66
  %v218 = vunpack.c.l.b16 %v67
  %v219 = vunpack.c.l.b16 %v68
  %v220 = vunpack.c.l.b16 %v69
  %v221 = vunpack.c.l.b16 %v70
  %v222 = vunpack.c.l.b16 %v71
  %v223 = vunpack.c.l.b16 %v72
  %v224 = vunpack.c.l.b16 %v73
  %v225 = vunpack.c.l.b16 %v74
  %v226 = vunpack.c.l.b16 %v75
  %v227 = vunpack.c.l.b16 %v76
  %v228 = vunpack.c.l.b16 %v77
  %v229 = vunpack.c.l.b16 %v78
  %v230 = vpack.c.b16 %v167, %v166
  %v231 = vpack.c.b16 %v169, %v168
  %v232 = vpack.c.b16 %v171, %v170
  %v233 = vpack.c.b16 %v173, %v172
  %v234 = vpack.c.b16 %v175, %v174
  %v235 = vpack.c.b16 %v177, %v176
  %v236 = vpack.c.b16 %v179, %v178
  %v237 = vpack.c.b16 %v181, %v180
  %v238 = vpack.c.b16 %v183, %v182
  %v239 = vpack.c.b16 %v185, %v184
  %v240 = vpack.c.b16 %v187, %v186
  %v241 = vpack.c.b16 %v189, %v188
  %v242 = vpack.c.b16 %v191, %v190
  %v243 = vpack.c.b16 %v193, %v192
  %v244 = vpack.c.b16 %v195, %v194
  %v245 = vpack.c.b16 %v197, %v196
  %v246 = vpack.c.b16 %v199, %v198
  %v247 = vpack.c.b16 %v201, %v200
  %v248 = vpack.c.b16 %v203, %v202
  %v249 = vpack.c.b16 %v205, %v204
  %v250 = vpack.c.b16 %v207, %v206
  %v251 = vpack.c.b16 %v209, %v208
  %v252 = vpack.c.b16 %v211, %v210
  %v253 = vpack.c.b16 %v213, %v212
  %v254 = vpack.c.b16 %v215, %v214
  %v255 = vpack.c.b16 %v217, %v216
  %v256 = vpack.c.b16 %v219, %v218
  %v257 = vpack.c.b16 %v221, %v220
  %v258 = vpack.c.b16 %v223, %v222
  %v259 = vpack.c.b16 %v225, %v224
  %v260 = vpack.c.b16 %v227, %v226
  %v261 = vpack.c.b16 %v229, %v228
  %v310 = vunpack.c.l.b16 %v79
  %v311 = vunpack.c.l.b16 %v80
  %v312 = vunpack.c.l.b16 %v81
  %v313 = vunpack.c.l.b16 %v82
  %v314 = vunpack.c.l.b16 %v83
  %v315 = vunpack.c.l.b16 %v84
  %v316 = vunpack.c.l.b16 %v85
  %v317 = vunpack.c.l.b16 %v86
  %v318 = vunpack.c.l.b16 %v87
  %v319 = vunpack.c.l.b16 %v88
  %v320 = vunpack.c.l.b16 %v89
  %v321 = vunpack.c.l.b16 %v90
  %v322 = vunpack.c.l.b16 %v91
  %v323 = vunpack.c.l.b16 %v92
  %v324 = vunpack.c.l.b16 %v93
  %v325 = vunpack.c.l.b16 %v94
  %v326 = vpack.c.b16 %v311, %v310
  %v327 = vpack.c.b16 %v313, %v312
  %v328 = vpack.c.b16 %v315, %v314
  %v329 = vpack.c.b16 %v317, %v316
  %v330 = vpack.c.b16 %v319, %v318
  %v331 = vpack.c.b16 %v321, %v320
  %v332 = vpack.c.b16 %v323, %v322
  %v333 = vpack.c.b16 %v325, %v324
  %342 = vmatprep.subr.bf16.mxu0 0
  %343 = vmatpush1.bf16.msra.mxu0 %v333
  %344 = vmatprep.subr.bf16.mxu0 0
  %345 = vmatpush1.bf16.msra.mxu0 %v332
  %346 = vmatprep.subr.bf16.mxu0 0
  %347 = vmatpush1.bf16.msra.mxu0 %v331
  %348 = vmatprep.subr.bf16.mxu0 0
  %349 = vmatpush1.bf16.msra.mxu0 %v330
  %350 = vmatprep.subr.bf16.mxu0 0
  %351 = vmatpush1.bf16.msra.mxu0 %v329
  %352 = vmatprep.subr.bf16.mxu0 0
  %353 = vmatpush1.bf16.msra.mxu0 %v328
  %354 = vmatprep.subr.bf16.mxu0 0
  %355 = vmatpush1.bf16.msra.mxu0 %v327
  %356 = vmatprep.subr.bf16.mxu0 0
  %357 = vmatpush1.bf16.msra.mxu0 %v326
  %358 = vmatprep.subr.bf16.mxu0 0
  %359 = vmatpush2.bf16.msra.mxu0 0
  %360 = vmatprep.subr.bf16.mxu0 0
  %361 = vmatpush2.bf16.msra.mxu0 0
  %362 = vmatprep.subr.bf16.mxu0 0
  %363 = vmatpush2.bf16.msra.mxu0 0
  %364 = vmatprep.subr.bf16.mxu0 0
  %365 = vmatpush2.bf16.msra.mxu0 0
  %366 = vmatprep.subr.bf16.mxu0 0
  %367 = vmatpush2.bf16.msra.mxu0 0
  %368 = vmatprep.subr.bf16.mxu0 0
  %369 = vmatpush2.bf16.msra.mxu0 0
  %370 = vmatprep.subr.bf16.mxu0 0
  %371 = vmatpush2.bf16.msra.mxu0 0
  %372 = vmatprep.subr.bf16.mxu0 0
  %373 = vmatpush2.bf16.msra.mxu0 0
  %374 = vmatprep.mubr.bf16.mxu0 0
  %375 = vmatmul.mubr.bf16.gmra.mxu0 %v230
  %v376 = vpop.f32.mrf.mxu0
  %v377 = vadd.f32 %v100, %v376
  %v378 = vpop.f32.mrf.mxu0
  %v379 = vpop.f32.mrf.mxu0
  %v380 = vadd.f32 %v100, %v379
  %v381 = vpop.f32.mrf.mxu0
  %382 = vmatprep.mubr.bf16.mxu0 0
  %383 = vmatmul.mubr.bf16.gmra.mxu0 %v231
  %v384 = vpop.f32.mrf.mxu0
  %v385 = vadd.f32 %v100, %v384
  %v386 = vpop.f32.mrf.mxu0
  %v387 = vpop.f32.mrf.mxu0
  %v388 = vadd.f32 %v100, %v387
  %v389 = vpop.f32.mrf.mxu0
  %390 = vmatprep.mubr.bf16.mxu0 0
  %391 = vmatmul.mubr.bf16.gmra.mxu0 %v232
  %v392 = vpop.f32.mrf.mxu0
  %v393 = vadd.f32 %v100, %v392
  %v394 = vpop.f32.mrf.mxu0
  %v395 = vpop.f32.mrf.mxu0
  %v396 = vadd.f32 %v100, %v395
  %v397 = vpop.f32.mrf.mxu0
  %398 = vmatprep.mubr.bf16.mxu0 0
  %399 = vmatmul.mubr.bf16.gmra.mxu0 %v233
  %v400 = vpop.f32.mrf.mxu0
  %v401 = vadd.f32 %v100, %v400
  %v402 = vpop.f32.mrf.mxu0
  %v403 = vpop.f32.mrf.mxu0
  %v404 = vadd.f32 %v100, %v403
  %v405 = vpop.f32.mrf.mxu0
  %406 = vmatprep.mubr.bf16.mxu0 0
  %407 = vmatmul.mubr.bf16.gmra.mxu0 %v234
  %v408 = vpop.f32.mrf.mxu0
  %v409 = vadd.f32 %v100, %v408
  %v410 = vpop.f32.mrf.mxu0
  %v411 = vpop.f32.mrf.mxu0
  %v412 = vadd.f32 %v100, %v411
  %v413 = vpop.f32.mrf.mxu0
  %414 = vmatprep.mubr.bf16.mxu0 0
  %415 = vmatmul.mubr.bf16.gmra.mxu0 %v235
  %v416 = vpop.f32.mrf.mxu0
  %v417 = vadd.f32 %v100, %v416
  %v418 = vpop.f32.mrf.mxu0
  %v419 = vpop.f32.mrf.mxu0
  %v420 = vadd.f32 %v100, %v419
  %v421 = vpop.f32.mrf.mxu0
  %422 = vmatprep.mubr.bf16.mxu0 0
  %423 = vmatmul.mubr.bf16.gmra.mxu0 %v236
  %v424 = vpop.f32.mrf.mxu0
  %v425 = vadd.f32 %v100, %v424
  %v426 = vpop.f32.mrf.mxu0
  %v427 = vpop.f32.mrf.mxu0
  %v428 = vadd.f32 %v100, %v427
  %v429 = vpop.f32.mrf.mxu0
  %430 = vmatprep.mubr.bf16.mxu0 0
  %431 = vmatmul.mubr.bf16.gmra.mxu0 %v237
  %v432 = vpop.f32.mrf.mxu0
  %v433 = vadd.f32 %v100, %v432
  %v434 = vpop.f32.mrf.mxu0
  %v435 = vpop.f32.mrf.mxu0
  %v436 = vadd.f32 %v100, %v435
  %v437 = vpop.f32.mrf.mxu0
  %438 = vmatprep.mubr.bf16.mxu0 0
  %439 = vmatmul.mubr.bf16.gmra.mxu0 %v238
  %v440 = vpop.f32.mrf.mxu0
  %v441 = vadd.f32 %v100, %v440
  %v442 = vpop.f32.mrf.mxu0
  %v443 = vpop.f32.mrf.mxu0
  %v444 = vadd.f32 %v100, %v443
  %v445 = vpop.f32.mrf.mxu0
  %446 = vmatprep.mubr.bf16.mxu0 0
  %447 = vmatmul.mubr.bf16.gmra.mxu0 %v239
  %v448 = vpop.f32.mrf.mxu0
  %v449 = vadd.f32 %v100, %v448
  %v450 = vpop.f32.mrf.mxu0
  %v451 = vpop.f32.mrf.mxu0
  %v452 = vadd.f32 %v100, %v451
  %v453 = vpop.f32.mrf.mxu0
  %454 = vmatprep.mubr.bf16.mxu0 0
  %455 = vmatmul.mubr.bf16.gmra.mxu0 %v240
  %v456 = vpop.f32.mrf.mxu0
  %v457 = vadd.f32 %v100, %v456
  %v458 = vpop.f32.mrf.mxu0
  %v459 = vpop.f32.mrf.mxu0
  %v460 = vadd.f32 %v100, %v459
  %v461 = vpop.f32.mrf.mxu0
  %462 = vmatprep.mubr.bf16.mxu0 0
  %463 = vmatmul.mubr.bf16.gmra.mxu0 %v241
  %v464 = vpop.f32.mrf.mxu0
  %v465 = vadd.f32 %v100, %v464
  %v466 = vpop.f32.mrf.mxu0
  %v467 = vpop.f32.mrf.mxu0
  %v468 = vadd.f32 %v100, %v467
  %v469 = vpop.f32.mrf.mxu0
  %470 = vmatprep.mubr.bf16.mxu0 0
  %471 = vmatmul.mubr.bf16.gmra.mxu0 %v242
  %v472 = vpop.f32.mrf.mxu0
  %v473 = vadd.f32 %v100, %v472
  %v474 = vpop.f32.mrf.mxu0
  %v475 = vpop.f32.mrf.mxu0
  %v476 = vadd.f32 %v100, %v475
  %v477 = vpop.f32.mrf.mxu0
  %478 = vmatprep.mubr.bf16.mxu0 0
  %479 = vmatmul.mubr.bf16.gmra.mxu0 %v243
  %v480 = vpop.f32.mrf.mxu0
  %v481 = vadd.f32 %v100, %v480
  %v482 = vpop.f32.mrf.mxu0
  %v483 = vpop.f32.mrf.mxu0
  %v484 = vadd.f32 %v100, %v483
  %v485 = vpop.f32.mrf.mxu0
  %486 = vmatprep.mubr.bf16.mxu0 0
  %487 = vmatmul.mubr.bf16.gmra.mxu0 %v244
  %v488 = vpop.f32.mrf.mxu0
  %v489 = vadd.f32 %v100, %v488
  %v490 = vpop.f32.mrf.mxu0
  %v491 = vpop.f32.mrf.mxu0
  %v492 = vadd.f32 %v100, %v491
  %v493 = vpop.f32.mrf.mxu0
  %494 = vmatprep.mubr.bf16.mxu0 0
  %495 = vmatmul.mubr.bf16.gmra.mxu0 %v245
  %v496 = vpop.f32.mrf.mxu0
  %v497 = vadd.f32 %v100, %v496
  %v498 = vpop.f32.mrf.mxu0
  %v499 = vpop.f32.mrf.mxu0
  %v500 = vadd.f32 %v100, %v499
  %v501 = vpop.f32.mrf.mxu0
  %502 = vmatprep.mubr.bf16.mxu0 0
  %503 = vmatmul.mubr.bf16.gmra.mxu0 %v246
  %v504 = vpop.f32.mrf.mxu0
  %v505 = vadd.f32 %v100, %v504
  %v506 = vpop.f32.mrf.mxu0
  %v507 = vpop.f32.mrf.mxu0
  %v508 = vadd.f32 %v100, %v507
  %v509 = vpop.f32.mrf.mxu0
  %510 = vmatprep.mubr.bf16.mxu0 0
  %511 = vmatmul.mubr.bf16.gmra.mxu0 %v247
  %v512 = vpop.f32.mrf.mxu0
  %v513 = vadd.f32 %v100, %v512
  %v514 = vpop.f32.mrf.mxu0
  %v515 = vpop.f32.mrf.mxu0
  %v516 = vadd.f32 %v100, %v515
  %v517 = vpop.f32.mrf.mxu0
  %518 = vmatprep.mubr.bf16.mxu0 0
  %519 = vmatmul.mubr.bf16.gmra.mxu0 %v248
  %v520 = vpop.f32.mrf.mxu0
  %v521 = vadd.f32 %v100, %v520
  %v522 = vpop.f32.mrf.mxu0
  %v523 = vpop.f32.mrf.mxu0
  %v524 = vadd.f32 %v100, %v523
  %v525 = vpop.f32.mrf.mxu0
  %526 = vmatprep.mubr.bf16.mxu0 0
  %527 = vmatmul.mubr.bf16.gmra.mxu0 %v249
  %v528 = vpop.f32.mrf.mxu0
  %v529 = vadd.f32 %v100, %v528
  %v530 = vpop.f32.mrf.mxu0
  %v531 = vpop.f32.mrf.mxu0
  %v532 = vadd.f32 %v100, %v531
  %v533 = vpop.f32.mrf.mxu0
  %534 = vmatprep.mubr.bf16.mxu0 0
  %535 = vmatmul.mubr.bf16.gmra.mxu0 %v250
  %v536 = vpop.f32.mrf.mxu0
  %v537 = vadd.f32 %v100, %v536
  %v538 = vpop.f32.mrf.mxu0
  %v539 = vpop.f32.mrf.mxu0
  %v540 = vadd.f32 %v100, %v539
  %v541 = vpop.f32.mrf.mxu0
  %542 = vmatprep.mubr.bf16.mxu0 0
  %543 = vmatmul.mubr.bf16.gmra.mxu0 %v251
  %v544 = vpop.f32.mrf.mxu0
  %v545 = vadd.f32 %v100, %v544
  %v546 = vpop.f32.mrf.mxu0
  %v547 = vpop.f32.mrf.mxu0
  %v548 = vadd.f32 %v100, %v547
  %v549 = vpop.f32.mrf.mxu0
  %550 = vmatprep.mubr.bf16.mxu0 0
  %551 = vmatmul.mubr.bf16.gmra.mxu0 %v252
  %v552 = vpop.f32.mrf.mxu0
  %v553 = vadd.f32 %v100, %v552
  %v554 = vpop.f32.mrf.mxu0
  %v555 = vpop.f32.mrf.mxu0
  %v556 = vadd.f32 %v100, %v555
  %v557 = vpop.f32.mrf.mxu0
  %558 = vmatprep.mubr.bf16.mxu0 0
  %559 = vmatmul.mubr.bf16.gmra.mxu0 %v253
  %v560 = vpop.f32.mrf.mxu0
  %v561 = vadd.f32 %v100, %v560
  %v562 = vpop.f32.mrf.mxu0
  %v563 = vpop.f32.mrf.mxu0
  %v564 = vadd.f32 %v100, %v563
  %v565 = vpop.f32.mrf.mxu0
  %566 = vmatprep.mubr.bf16.mxu0 0
  %567 = vmatmul.mubr.bf16.gmra.mxu0 %v254
  %v568 = vpop.f32.mrf.mxu0
  %v569 = vadd.f32 %v100, %v568
  %v570 = vpop.f32.mrf.mxu0
  %v571 = vpop.f32.mrf.mxu0
  %v572 = vadd.f32 %v100, %v571
  %v573 = vpop.f32.mrf.mxu0
  %574 = vmatprep.mubr.bf16.mxu0 0
  %575 = vmatmul.mubr.bf16.gmra.mxu0 %v255
  %v576 = vpop.f32.mrf.mxu0
  %v577 = vadd.f32 %v100, %v576
  %v578 = vpop.f32.mrf.mxu0
  %v579 = vpop.f32.mrf.mxu0
  %v580 = vadd.f32 %v100, %v579
  %v581 = vpop.f32.mrf.mxu0
  %582 = vmatprep.mubr.bf16.mxu0 0
  %583 = vmatmul.mubr.bf16.gmra.mxu0 %v256
  %v584 = vpop.f32.mrf.mxu0
  %v585 = vadd.f32 %v100, %v584
  %v586 = vpop.f32.mrf.mxu0
  %v587 = vpop.f32.mrf.mxu0
  %v588 = vadd.f32 %v100, %v587
  %v589 = vpop.f32.mrf.mxu0
  %590 = vmatprep.mubr.bf16.mxu0 0
  %591 = vmatmul.mubr.bf16.gmra.mxu0 %v257
  %v592 = vpop.f32.mrf.mxu0
  %v593 = vadd.f32 %v100, %v592
  %v594 = vpop.f32.mrf.mxu0
  %v595 = vpop.f32.mrf.mxu0
  %v596 = vadd.f32 %v100, %v595
  %v597 = vpop.f32.mrf.mxu0
  %598 = vmatprep.mubr.bf16.mxu0 0
  %599 = vmatmul.mubr.bf16.gmra.mxu0 %v258
  %v600 = vpop.f32.mrf.mxu0
  %v601 = vadd.f32 %v100, %v600
  %v602 = vpop.f32.mrf.mxu0
  %v603 = vpop.f32.mrf.mxu0
  %v604 = vadd.f32 %v100, %v603
  %v605 = vpop.f32.mrf.mxu0
  %606 = vmatprep.mubr.bf16.mxu0 0
  %607 = vmatmul.mubr.bf16.gmra.mxu0 %v259
  %v608 = vpop.f32.mrf.mxu0
  %v609 = vadd.f32 %v100, %v608
  %v610 = vpop.f32.mrf.mxu0
  %v611 = vpop.f32.mrf.mxu0
  %v612 = vadd.f32 %v100, %v611
  %v613 = vpop.f32.mrf.mxu0
  %614 = vmatprep.mubr.bf16.mxu0 0
  %615 = vmatmul.mubr.bf16.gmra.mxu0 %v260
  %v616 = vpop.f32.mrf.mxu0
  %v617 = vadd.f32 %v100, %v616
  %v618 = vpop.f32.mrf.mxu0
  %v619 = vpop.f32.mrf.mxu0
  %v620 = vadd.f32 %v100, %v619
  %v621 = vpop.f32.mrf.mxu0
  %622 = vmatprep.mubr.bf16.mxu0 0
  %623 = vmatmul.mubr.bf16.gmra.mxu0 %v261
  %v624 = vpop.f32.mrf.mxu0
  %v625 = vadd.f32 %v100, %v624
  %v626 = vpop.f32.mrf.mxu0
  %v627 = vpop.f32.mrf.mxu0
  %v628 = vadd.f32 %v100, %v627
  %v629 = vpop.f32.mrf.mxu0
  %630 = vdwg.mxu0
  %631 = vst [vmem:[%s3] sm:$0xff] %v377
  %632 = vst [vmem:[%s3 + $0x8] sm:$0xff] %v380
  %633 = vst [vmem:[%s3 + $0x10] sm:$0xff] %v385
  %634 = vst [vmem:[%s3 + $0x18] sm:$0xff] %v388
  %635 = vst [vmem:[%s3 + $0x20] sm:$0xff] %v393
  %636 = vst [vmem:[%s3 + $0x28] sm:$0xff] %v396
  %637 = vst [vmem:[%s3 + $0x30] sm:$0xff] %v401
  %638 = vst [vmem:[%s3 + $0x38] sm:$0xff] %v404
  %639 = vst [vmem:[%s3 + $0x40] sm:$0xff] %v409
  %640 = vst [vmem:[%s3 + $0x48] sm:$0xff] %v412
  %641 = vst [vmem:[%s3 + $0x50] sm:$0xff] %v417
  %642 = vst [vmem:[%s3 + $0x58] sm:$0xff] %v420
  %643 = vst [vmem:[%s3 + $0x60] sm:$0xff] %v425
  %644 = vst [vmem:[%s3 + $0x68] sm:$0xff] %v428
  %645 = vst [vmem:[%s3 + $0x70] sm:$0xff] %v433
  %646 = vst [vmem:[%s3 + $0x78] sm:$0xff] %v436
  %647 = vst [vmem:[%s3 + $0x80] sm:$0xff] %v441
  %648 = vst [vmem:[%s3 + $0x88] sm:$0xff] %v444
  %649 = vst [vmem:[%s3 + $0x90] sm:$0xff] %v449
  %650 = vst [vmem:[%s3 + $0x98] sm:$0xff] %v452
  %651 = vst [vmem:[%s3 + $0xa0] sm:$0xff] %v457
  %652 = vst [vmem:[%s3 + $0xa8] sm:$0xff] %v460
  %653 = vst [vmem:[%s3 + $0xb0] sm:$0xff] %v465
  %654 = vst [vmem:[%s3 + $0xb8] sm:$0xff] %v468
  %655 = vst [vmem:[%s3 + $0xc0] sm:$0xff] %v473
  %656 = vst [vmem:[%s3 + $0xc8] sm:$0xff] %v476
  %657 = vst [vmem:[%s3 + $0xd0] sm:$0xff] %v481
  %658 = vst [vmem:[%s3 + $0xd8] sm:$0xff] %v484
  %659 = vst [vmem:[%s3 + $0xe0] sm:$0xff] %v489
  %660 = vst [vmem:[%s3 + $0xe8] sm:$0xff] %v492
  %661 = vst [vmem:[%s3 + $0xf0] sm:$0xff] %v497
  %662 = vst [vmem:[%s3 + $0xf8] sm:$0xff] %v500
  %663 = vst [vmem:[%s3 + $0x100] sm:$0xff] %v505
  %664 = vst [vmem:[%s3 + $0x108] sm:$0xff] %v508
  %665 = vst [vmem:[%s3 + $0x110] sm:$0xff] %v513
  %666 = vst [vmem:[%s3 + $0x118] sm:$0xff] %v516
  %667 = vst [vmem:[%s3 + $0x120] sm:$0xff] %v521
  %668 = vst [vmem:[%s3 + $0x128] sm:$0xff] %v524
  %669 = vst [vmem:[%s3 + $0x130] sm:$0xff] %v529
  %670 = vst [vmem:[%s3 + $0x138] sm:$0xff] %v532
  %671 = vst [vmem:[%s3 + $0x140] sm:$0xff] %v537
  %672 = vst [vmem:[%s3 + $0x148] sm:$0xff] %v540
  %673 = vst [vmem:[%s3 + $0x150] sm:$0xff] %v545
  %674 = vst [vmem:[%s3 + $0x158] sm:$0xff] %v548
  %675 = vst [vmem:[%s3 + $0x160] sm:$0xff] %v553
  %676 = vst [vmem:[%s3 + $0x168] sm:$0xff] %v556
  %677 = vst [vmem:[%s3 + $0x170] sm:$0xff] %v561
  %678 = vst [vmem:[%s3 + $0x178] sm:$0xff] %v564
  %679 = vst [vmem:[%s3 + $0x180] sm:$0xff] %v569
  %680 = vst [vmem:[%s3 + $0x188] sm:$0xff] %v572
  %681 = vst [vmem:[%s3 + $0x190] sm:$0xff] %v577
  %682 = vst [vmem:[%s3 + $0x198] sm:$0xff] %v580
  %683 = vst [vmem:[%s3 + $0x1a0] sm:$0xff] %v585
  %684 = vst [vmem:[%s3 + $0x1a8] sm:$0xff] %v588
  %685 = vst [vmem:[%s3 + $0x1b0] sm:$0xff] %v593
  %686 = vst [vmem:[%s3 + $0x1b8] sm:$0xff] %v596
  %687 = vst [vmem:[%s3 + $0x1c0] sm:$0xff] %v601
  %688 = vst [vmem:[%s3 + $0x1c8] sm:$0xff] %v604
  %689 = vst [vmem:[%s3 + $0x1d0] sm:$0xff] %v609
  %690 = vst [vmem:[%s3 + $0x1d8] sm:$0xff] %v612
  %691 = vst [vmem:[%s3 + $0x1e0] sm:$0xff] %v617
  %692 = vst [vmem:[%s3 + $0x1e8] sm:$0xff] %v620
  %693 = vst [vmem:[%s3 + $0x1f0] sm:$0xff] %v625
  %694 = vst [vmem:[%s3 + $0x1f8] sm:$0xff] %v628
  // Predicated region
  $region14: #{conv_layer_forward.2} parent=0 // pred_check
    _
  $region15: #{conv_layer_forward.2} parent=0 // pred_check_branch
    %696 = sbr.rel (0) target = $region17
  $region16: #{conv_layer_forward.2} parent=0 // pred_region
    _
  $region17: #{conv_layer_forward.2} parent=0 // pred_fallthru
    _
  // Predicated region
  $region18: #{conv_layer_forward.2} parent=0 // pred_check
    _
  $region19: #{conv_layer_forward.2} parent=0 // pred_check_branch
    %698 = sbr.rel (0) target = $region21
  $region20: #{conv_layer_forward.2} parent=0 // pred_region
    _
  $region21: #{conv_layer_forward.2} parent=0 // pred_fallthru
    _

// kernel: conv_layer_forward.3
$region0: #{conv_layer_forward.3}
  #allocation0 [shape = 'u32[]', space=smem, size = 0x4, offset = 0x4, fixed_abs, tag = 'smem constant byte address 0x4 - core index']
  #allocation1 [shape = 'u32[144,128]{1,0:T(1,128)}', space=vmem, size = 0x12000, scoped, tag = 'internal scratch']
  %s0 = inlined_call_operand.vmem [shape: f32[64,256], index: 0, kind: input, shape index: {}]
  %s1 = inlined_call_operand.vmem [shape: f32[64,1], index: 1, kind: input, shape index: {}]
  %s2 = inlined_call_operand.vmem [shape: f32[64,1], index: 2, kind: input, shape index: {}]
  %s3 = inlined_call_operand.vmem [shape: f32[64,256], index: 3, kind: output, shape index: {}]
  %s4 = sld [smem:[#allocation0]]
  $region22: #{conv_layer_forward.3} parent=0
    _
  %s6 = ssub.s32 1, %s4
  %s7 = scalar_select 0, %s6, %s4
  // Predicated region
  $region2: #{conv_layer_forward.3} parent=0 // pred_check
    _
  $region3: #{conv_layer_forward.3} parent=0 // pred_check_branch
    %9 = sbr.rel (0) target = $region5
  $region4: #{conv_layer_forward.3} parent=0 // pred_region
    _
  $region5: #{conv_layer_forward.3} parent=0 // pred_fallthru
    _
  // Predicated region
  $region6: #{conv_layer_forward.3} parent=0 // pred_check
    _
  $region7: #{conv_layer_forward.3} parent=0 // pred_check_branch
    %11 = sbr.rel (0) target = $region9
  $region8: #{conv_layer_forward.3} parent=0 // pred_region
    _
  $region9: #{conv_layer_forward.3} parent=0 // pred_fallthru
    _
  // Predicated region
  $region10: #{conv_layer_forward.3} parent=0 // pred_check
    _
  $region11: #{conv_layer_forward.3} parent=0 // pred_check_branch
    %13 = sbr.rel (0) target = $region13
  $region12: #{conv_layer_forward.3} parent=0 // pred_region
    _
  $region13: #{conv_layer_forward.3} parent=0 // pred_fallthru
    _
  %v14 = vld [vmem:[%s0] sm:$0xff]
  %v15 = vld [vmem:[%s0 + $0x8] sm:$0xff]
  %v16 = vld [vmem:[%s0 + $0x10] sm:$0xff]
  %v17 = vld [vmem:[%s0 + $0x18] sm:$0xff]
  %v18 = vld [vmem:[%s0 + $0x20] sm:$0xff]
  %v19 = vld [vmem:[%s0 + $0x28] sm:$0xff]
  %v20 = vld [vmem:[%s0 + $0x30] sm:$0xff]
  %v21 = vld [vmem:[%s0 + $0x38] sm:$0xff]
  %v22 = vld [vmem:[%s0 + $0x40] sm:$0xff]
  %v23 = vld [vmem:[%s0 + $0x48] sm:$0xff]
  %v24 = vld [vmem:[%s0 + $0x50] sm:$0xff]
  %v25 = vld [vmem:[%s0 + $0x58] sm:$0xff]
  %v26 = vld [vmem:[%s0 + $0x60] sm:$0xff]
  %v27 = vld [vmem:[%s0 + $0x68] sm:$0xff]
  %v28 = vld [vmem:[%s0 + $0x70] sm:$0xff]
  %v29 = vld [vmem:[%s0 + $0x78] sm:$0xff]
  %v30 = vadd.f32 %v14, %v15
  %31 = vadd.xlane.f32.xlu0 %v30
  %v32 = vpop.xlane.xlu0 %31
  %v33 = vadd.f32 %v16, %v17
  %34 = vadd.xlane.f32.xlu0 %v33
  %v35 = vpop.xlane.xlu0 %34
  %v36 = vadd.f32 %v18, %v19
  %37 = vadd.xlane.f32.xlu0 %v36
  %v38 = vpop.xlane.xlu0 %37
  %v39 = vadd.f32 %v20, %v21
  %40 = vadd.xlane.f32.xlu0 %v39
  %v41 = vpop.xlane.xlu0 %40
  %v42 = vadd.f32 %v22, %v23
  %43 = vadd.xlane.f32.xlu0 %v42
  %v44 = vpop.xlane.xlu0 %43
  %v45 = vadd.f32 %v24, %v25
  %46 = vadd.xlane.f32.xlu0 %v45
  %v47 = vpop.xlane.xlu0 %46
  %v48 = vadd.f32 %v26, %v27
  %49 = vadd.xlane.f32.xlu0 %v48
  %v50 = vpop.xlane.xlu0 %49
  %v51 = vadd.f32 %v28, %v29
  %52 = vadd.xlane.f32.xlu0 %v51
  %v53 = vpop.xlane.xlu0 %52
  %v54 = vrcp.pop 256.0
  %v55 = vmul.f32 %v32, %v54
  %v56 = vmul.f32 %v35, %v54
  %v57 = vmul.f32 %v38, %v54
  %v58 = vmul.f32 %v41, %v54
  %v59 = vmul.f32 %v44, %v54
  %v60 = vmul.f32 %v47, %v54
  %v61 = vmul.f32 %v50, %v54
  %v62 = vmul.f32 %v53, %v54
  %v63 = vsub.f32 %v14, %v55
  %v64 = vsub.f32 %v15, %v55
  %v65 = vsub.f32 %v16, %v56
  %v66 = vsub.f32 %v17, %v56
  %v67 = vsub.f32 %v18, %v57
  %v68 = vsub.f32 %v19, %v57
  %v69 = vsub.f32 %v20, %v58
  %v70 = vsub.f32 %v21, %v58
  %v71 = vsub.f32 %v22, %v59
  %v72 = vsub.f32 %v23, %v59
  %v73 = vsub.f32 %v24, %v60
  %v74 = vsub.f32 %v25, %v60
  %v75 = vsub.f32 %v26, %v61
  %v76 = vsub.f32 %v27, %v61
  %v77 = vsub.f32 %v28, %v62
  %v78 = vsub.f32 %v29, %v62
  %v79 = vmul.f32 %v63, %v63
  %v80 = vmul.f32 %v64, %v64
  %v81 = vmul.f32 %v65, %v65
  %v82 = vmul.f32 %v66, %v66
  %v83 = vmul.f32 %v67, %v67
  %v84 = vmul.f32 %v68, %v68
  %v85 = vmul.f32 %v69, %v69
  %v86 = vmul.f32 %v70, %v70
  %v87 = vmul.f32 %v71, %v71
  %v88 = vmul.f32 %v72, %v72
  %v89 = vmul.f32 %v73, %v73
  %v90 = vmul.f32 %v74, %v74
  %v91 = vmul.f32 %v75, %v75
  %v92 = vmul.f32 %v76, %v76
  %v93 = vmul.f32 %v77, %v77
  %v94 = vmul.f32 %v78, %v78
  %v95 = vadd.f32 %v79, %v80
  %96 = vadd.xlane.f32.xlu0 %v95
  %v97 = vpop.xlane.xlu0 %96
  %v98 = vadd.f32 %v81, %v82
  %99 = vadd.xlane.f32.xlu0 %v98
  %v100 = vpop.xlane.xlu0 %99
  %v101 = vadd.f32 %v83, %v84
  %102 = vadd.xlane.f32.xlu0 %v101
  %v103 = vpop.xlane.xlu0 %102
  %v104 = vadd.f32 %v85, %v86
  %105 = vadd.xlane.f32.xlu0 %v104
  %v106 = vpop.xlane.xlu0 %105
  %v107 = vadd.f32 %v87, %v88
  %108 = vadd.xlane.f32.xlu0 %v107
  %v109 = vpop.xlane.xlu0 %108
  %v110 = vadd.f32 %v89, %v90
  %111 = vadd.xlane.f32.xlu0 %v110
  %v112 = vpop.xlane.xlu0 %111
  %v113 = vadd.f32 %v91, %v92
  %114 = vadd.xlane.f32.xlu0 %v113
  %v115 = vpop.xlane.xlu0 %114
  %v116 = vadd.f32 %v93, %v94
  %117 = vadd.xlane.f32.xlu0 %v116
  %v118 = vpop.xlane.xlu0 %117
  %v119 = vmul.f32 %v97, %v54
  %v120 = vmul.f32 %v100, %v54
  %v121 = vmul.f32 %v103, %v54
  %v122 = vmul.f32 %v106, %v54
  %v123 = vmul.f32 %v109, %v54
  %v124 = vmul.f32 %v112, %v54
  %v125 = vmul.f32 %v115, %v54
  %v126 = vmul.f32 %v118, %v54
  %v127 = vadd.f32 %v119, 1e-05
  %v128 = vadd.f32 %v120, 1e-05
  %v129 = vadd.f32 %v121, 1e-05
  %v130 = vadd.f32 %v122, 1e-05
  %v131 = vadd.f32 %v123, 1e-05
  %v132 = vadd.f32 %v124, 1e-05
  %v133 = vadd.f32 %v125, 1e-05
  %v134 = vadd.f32 %v126, 1e-05
  %v135 = vrsqrt.pop %v127
  %v136 = vrsqrt.pop %v128
  %v137 = vrsqrt.pop %v129
  %v138 = vrsqrt.pop %v130
  %v139 = vrsqrt.pop %v131
  %v140 = vrsqrt.pop %v132
  %v141 = vrsqrt.pop %v133
  %v142 = vrsqrt.pop %v134
  %v143 = vmul.f32 %v63, %v135
  %v144 = vmul.f32 %v64, %v135
  %v145 = vmul.f32 %v65, %v136
  %v146 = vmul.f32 %v66, %v136
  %v147 = vmul.f32 %v67, %v137
  %v148 = vmul.f32 %v68, %v137
  %v149 = vmul.f32 %v69, %v138
  %v150 = vmul.f32 %v70, %v138
  %v151 = vmul.f32 %v71, %v139
  %v152 = vmul.f32 %v72, %v139
  %v153 = vmul.f32 %v73, %v140
  %v154 = vmul.f32 %v74, %v140
  %v155 = vmul.f32 %v75, %v141
  %v156 = vmul.f32 %v76, %v141
  %v157 = vmul.f32 %v77, %v142
  %v158 = vmul.f32 %v78, %v142
  %v159 = vld [vmem:[%s1] sm:$0xff]
  %v160 = vld [vmem:[%s1 + $0x8] sm:$0xff]
  %v161 = vld [vmem:[%s1 + $0x10] sm:$0xff]
  %v162 = vld [vmem:[%s1 + $0x18] sm:$0xff]
  %v163 = vld [vmem:[%s1 + $0x20] sm:$0xff]
  %v164 = vld [vmem:[%s1 + $0x28] sm:$0xff]
  %v165 = vld [vmem:[%s1 + $0x30] sm:$0xff]
  %v166 = vld [vmem:[%s1 + $0x38] sm:$0xff]
  %168 = vset.pattern.permute.xlu0 0
  %169 = vperm.xlu0 %168, %v159
  %v170 = vpop.permute.xlu0 %169
  %173 = vset.pattern.permute.xlu0 0
  %174 = vperm.xlu0 %173, %v160
  %v175 = vpop.permute.xlu0 %174
  %178 = vset.pattern.permute.xlu0 0
  %179 = vperm.xlu0 %178, %v161
  %v180 = vpop.permute.xlu0 %179
  %183 = vset.pattern.permute.xlu0 0
  %184 = vperm.xlu0 %183, %v162
  %v185 = vpop.permute.xlu0 %184
  %188 = vset.pattern.permute.xlu0 0
  %189 = vperm.xlu0 %188, %v163
  %v190 = vpop.permute.xlu0 %189
  %193 = vset.pattern.permute.xlu0 0
  %194 = vperm.xlu0 %193, %v164
  %v195 = vpop.permute.xlu0 %194
  %198 = vset.pattern.permute.xlu0 0
  %199 = vperm.xlu0 %198, %v165
  %v200 = vpop.permute.xlu0 %199
  %203 = vset.pattern.permute.xlu0 0
  %204 = vperm.xlu0 %203, %v166
  %v205 = vpop.permute.xlu0 %204
  %v207 = vmul.f32 %v143, %v170
  %v208 = vmul.f32 %v144, %v170
  %v209 = vmul.f32 %v145, %v175
  %v210 = vmul.f32 %v146, %v175
  %v211 = vmul.f32 %v147, %v180
  %v212 = vmul.f32 %v148, %v180
  %v213 = vmul.f32 %v149, %v185
  %v214 = vmul.f32 %v150, %v185
  %v215 = vmul.f32 %v151, %v190
  %v216 = vmul.f32 %v152, %v190
  %v217 = vmul.f32 %v153, %v195
  %v218 = vmul.f32 %v154, %v195
  %v219 = vmul.f32 %v155, %v200
  %v220 = vmul.f32 %v156, %v200
  %v221 = vmul.f32 %v157, %v205
  %v222 = vmul.f32 %v158, %v205
  %v223 = vld [vmem:[%s2] sm:$0xff]
  %v224 = vld [vmem:[%s2 + $0x8] sm:$0xff]
  %v225 = vld [vmem:[%s2 + $0x10] sm:$0xff]
  %v226 = vld [vmem:[%s2 + $0x18] sm:$0xff]
  %v227 = vld [vmem:[%s2 + $0x20] sm:$0xff]
  %v228 = vld [vmem:[%s2 + $0x28] sm:$0xff]
  %v229 = vld [vmem:[%s2 + $0x30] sm:$0xff]
  %v230 = vld [vmem:[%s2 + $0x38] sm:$0xff]
  %232 = vset.pattern.permute.xlu0 0
  %233 = vperm.xlu0 %232, %v223
  %v234 = vpop.permute.xlu0 %233
  %237 = vset.pattern.permute.xlu0 0
  %238 = vperm.xlu0 %237, %v224
  %v239 = vpop.permute.xlu0 %238
  %242 = vset.pattern.permute.xlu0 0
  %243 = vperm.xlu0 %242, %v225
  %v244 = vpop.permute.xlu0 %243
  %247 = vset.pattern.permute.xlu0 0
  %248 = vperm.xlu0 %247, %v226
  %v249 = vpop.permute.xlu0 %248
  %252 = vset.pattern.permute.xlu0 0
  %253 = vperm.xlu0 %252, %v227
  %v254 = vpop.permute.xlu0 %253
  %257 = vset.pattern.permute.xlu0 0
  %258 = vperm.xlu0 %257, %v228
  %v259 = vpop.permute.xlu0 %258
  %262 = vset.pattern.permute.xlu0 0
  %263 = vperm.xlu0 %262, %v229
  %v264 = vpop.permute.xlu0 %263
  %267 = vset.pattern.permute.xlu0 0
  %268 = vperm.xlu0 %267, %v230
  %v269 = vpop.permute.xlu0 %268
  %v271 = vadd.f32 %v207, %v234
  %v272 = vadd.f32 %v208, %v234
  %v273 = vadd.f32 %v209, %v239
  %v274 = vadd.f32 %v210, %v239
  %v275 = vadd.f32 %v211, %v244
  %v276 = vadd.f32 %v212, %v244
  %v277 = vadd.f32 %v213, %v249
  %v278 = vadd.f32 %v214, %v249
  %v279 = vadd.f32 %v215, %v254
  %v280 = vadd.f32 %v216, %v254
  %v281 = vadd.f32 %v217, %v259
  %v282 = vadd.f32 %v218, %v259
  %v283 = vadd.f32 %v219, %v264
  %v284 = vadd.f32 %v220, %v264
  %v285 = vadd.f32 %v221, %v269
  %v286 = vadd.f32 %v222, %v269
  %287 = vst [vmem:[%s3] sm:$0xff] %v271
  %288 = vst [vmem:[%s3 + $0x8] sm:$0xff] %v272
  %289 = vst [vmem:[%s3 + $0x10] sm:$0xff] %v273
  %290 = vst [vmem:[%s3 + $0x18] sm:$0xff] %v274
  %291 = vst [vmem:[%s3 + $0x20] sm:$0xff] %v275
  %292 = vst [vmem:[%s3 + $0x28] sm:$0xff] %v276
  %293 = vst [vmem:[%s3 + $0x30] sm:$0xff] %v277
  %294 = vst [vmem:[%s3 + $0x38] sm:$0xff] %v278
  %295 = vst [vmem:[%s3 + $0x40] sm:$0xff] %v279
  %296 = vst [vmem:[%s3 + $0x48] sm:$0xff] %v280
  %297 = vst [vmem:[%s3 + $0x50] sm:$0xff] %v281
  %298 = vst [vmem:[%s3 + $0x58] sm:$0xff] %v282
  %299 = vst [vmem:[%s3 + $0x60] sm:$0xff] %v283
  %300 = vst [vmem:[%s3 + $0x68] sm:$0xff] %v284
  %301 = vst [vmem:[%s3 + $0x70] sm:$0xff] %v285
  %302 = vst [vmem:[%s3 + $0x78] sm:$0xff] %v286
  // Predicated region
  $region14: #{conv_layer_forward.3} parent=0 // pred_check
    _
  $region15: #{conv_layer_forward.3} parent=0 // pred_check_branch
    %304 = sbr.rel (0) target = $region17
  $region16: #{conv_layer_forward.3} parent=0 // pred_region
    _
  $region17: #{conv_layer_forward.3} parent=0 // pred_fallthru
    _
  // Predicated region
  $region18: #{conv_layer_forward.3} parent=0 // pred_check
    _
  $region19: #{conv_layer_forward.3} parent=0 // pred_check_branch
    %306 = sbr.rel (0) target = $region21
  $region20: #{conv_layer_forward.3} parent=0 // pred_region
    _
  $region21: #{conv_layer_forward.3} parent=0 // pred_fallthru
    _

</llo_original>
